<compile_context>
chip_gen: v7x
topology: tpu7x:2x2x1
jax: 0.10.0
libtpu: 0.0.40
codegen_flags: <defaults>
</compile_context>

<pallas_src>
import math
from functools import partial

import jax
import jax.numpy as jnp
from jax.experimental import pallas as pl
from jax.experimental.pallas import tpu as pltpu


# ---------------------------------------------------------------------------
# Kernel
# ---------------------------------------------------------------------------
def _pe_add_kernel(scale_ref, pe_ref, x_ref, o_ref, *, batch):
    # scale_ref: (1,) f32 in SMEM; pe_ref: (TS, D) in VMEM; x_ref/o_ref: (TS, B*D) in VMEM.
    scale = scale_ref[0]
    # scale * pe in f32 on the small pe tile, cast ONCE to the activation dtype; the big
    # add runs in x's native dtype (bf16-native VALUs on v6e/v7x, no whole-tile upcast).
    pe_scaled = (scale * pe_ref[...].astype(jnp.float32)).astype(x_ref.dtype)  # (TS, D)
    # Row-major (S, B, D) flattened to (S, B*D): column b*D + d holds x[s, b, d], so the
    # pe row simply repeats B times along the lane axis.
    o_ref[...] = x_ref[...] + jnp.tile(pe_scaled, (1, batch))                  # (TS, B*D)


# ---------------------------------------------------------------------------
# Tiling / VMEM budgeting
# ---------------------------------------------------------------------------
def _sublane(dtype):
    # Min sublane tile per dtype: f32 -> 8, bf16/f16 -> 16, int8/fp8 -> 32.
    return {1: 32, 2: 16, 4: 8}.get(jnp.dtype(dtype).itemsize, 8)


def _round_up(v, m):
    return -(-v // m) * m


def _derive_tile(S, B, D, x_dtype, pe_dtype):
    """Pick a sequence tile size + scoped VMEM limit (padding- and device-aware)."""
    sublane = max(_sublane(x_dtype), _sublane(pe_dtype))
    x_item = jnp.dtype(x_dtype).itemsize
    pe_item = jnp.dtype(pe_dtype).itemsize

    try:
        vmem_cap = pltpu.get_tpu_info().vmem_capacity_bytes
    except Exception:
        vmem_cap = 64 << 20                          # conservative: v7x per-TC VMEM
    # Per-TensorCore budget: with dimension_semantics=("parallel",) v7x shards the S-grid
    # across 2 TCs (64 MiB each), so keep the scoped limit <= half the physical VMEM.
    vmem_limit = int(max(16 << 20, min(vmem_cap // 2, 64 << 20)))
    buf_budget = vmem_limit // 2                     # headroom for compiler scratch / sems

    # Padding-aware per-row VMEM bytes (lane dim padded to 128; ts kept sublane-aligned).
    x_row = _round_up(B * D, 128) * x_item           # one row of the x-in / out block
    pe_row = _round_up(D, 128) * pe_item
    bytes_per_row = 2 * (2 * x_row + pe_row)         # double-buffered by the pipeline

    ts_vmem = buf_budget // max(1, bytes_per_row)    # fits the per-core VMEM budget
    ts_block = (8 << 20) // max(1, x_row)            # ~8 MiB of x per block is plenty
    ts_steps = _round_up(pl.cdiv(S, 8), sublane)     # aim for >= ~8 grid steps (overlap)
    ts = max(sublane, min(ts_vmem, ts_block, ts_steps))

    if ts >= S:
        ts = S                                       # full-dim block satisfies tiling rule
    else:
        ts = max(sublane, (ts // sublane) * sublane)
    return int(ts), vmem_limit, sublane


# ---------------------------------------------------------------------------
# Wrapper
# ---------------------------------------------------------------------------
def positional_encoding_forward(x, pe_table, scale, *, tile_rows=None, donate_x=False):
    """x: (S, B, D); pe_table: (max_len, D); scale: (1,) float32.

    Computes x + scale * pe[:S] (pe broadcast over batch) == the PyTorch module's forward
    with dropout in eval mode.
    """
    S, B, D = x.shape
    assert pe_table.shape[0] >= S and pe_table.shape[1] == D

    ts, vmem_limit, sublane = _derive_tile(S, B, D, x.dtype, pe_table.dtype)
    if tile_rows is not None:                        # optional override (tests / tuning)
        ts = min(ts, int(tile_rows))
        ts = S if ts >= S else max(sublane, (ts // sublane) * sublane)
    grid = (pl.cdiv(S, ts),)

    # pe: keep the full table (no per-call slice+convert) whenever the block's sublane dim
    # is tile-aligned; only fall back to a [:S] slice when ts == S isn't a multiple of 8.
    pe_in = pe_table if (ts % 8 == 0 or ts == pe_table.shape[0]) else pe_table[:S]

    # Lane-dense layout: free row-major view, last block dim spans the full fused axis.
    x2d = x.reshape(S, B * D)

    kwargs = {}
    if donate_x:
        # x2d is input index 2 -> alias to output 0 (pair with donate_argnums in the jit).
        kwargs["input_output_aliases"] = {2: 0}

    out2d = pl.pallas_call(
        partial(_pe_add_kernel, batch=B),
        out_shape=jax.ShapeDtypeStruct((S, B * D), x.dtype),
        grid=grid,
        in_specs=[
            pl.BlockSpec(memory_space=pltpu.MemorySpace.SMEM),  # scale: scalar, untiled
            pl.BlockSpec((ts, D), lambda i: (i, 0)),            # pe rows for this S-tile
            pl.BlockSpec((ts, B * D), lambda i: (i, 0)),        # x (lane-dense)
        ],
        out_specs=pl.BlockSpec((ts, B * D), lambda i: (i, 0)),
        compiler_params=pltpu.CompilerParams(
            dimension_semantics=("parallel",),       # shard S-tiles across v7x's 2 TCs
            vmem_limit_bytes=vmem_limit,
        ),
        **kwargs,
    )(scale, pe_in, x2d)
    return out2d.reshape(S, B, D)


# ---------------------------------------------------------------------------
# Parameter / buffer construction (matches the PyTorch __init__)
# ---------------------------------------------------------------------------
def make_pe_table(max_len, d_model):
    position = jnp.arange(max_len, dtype=jnp.float32)[:, None]               # (max_len, 1)
    div_term = jnp.exp(
        jnp.arange(0, d_model, 2, dtype=jnp.float32) * (-math.log(10000.0) / d_model)
    )                                                                        # (d_model//2,)
    angles = position * div_term                                             # (max_len, d/2)
    pe = jnp.zeros((max_len, d_model), dtype=jnp.float32)
    pe = pe.at[:, 0::2].set(jnp.sin(angles))
    pe = pe.at[:, 1::2].set(jnp.cos(angles))
    return pe


if __name__ == "__main__":
    d_model = 32
    max_len = 5000
    seq_len = 32        # small, but large enough for a multi-step tiled grid
    batch = 2

    # scale = nn.Parameter(torch.ones(1))
    scale = jnp.ones((1,), dtype=jnp.float32)
    pe_table = make_pe_table(max_len, d_model)

    key = jax.random.PRNGKey(0)
    x = jax.random.normal(key, (seq_len, batch, d_model), dtype=jnp.float32)

    # tile_rows=8 forces a 4-step grid at this toy size so the S-tiling / index_maps are tested.
    out = positional_encoding_forward(x, pe_table, scale, tile_rows=8)
    out = jax.block_until_ready(out)

    # Reference check (pure JAX) of the same forward math (dropout = identity in eval mode).
    ref = x + scale[0] * pe_table[:seq_len][:, None, :]
    assert out.shape == x.shape
    assert jnp.allclose(out, ref, atol=1e-6), "mismatch vs reference"

    print("KERNEL_OK")
</pallas_src>

<mosaic_0001>
module attributes {stable_mosaic.version = 11 : i64} {
  func.func @_pe_add_kernel(%arg0: i32, %arg1: memref<1xf32, #tpu.memory_space<smem>>, %arg2: memref<8x32xf32, #tpu.memory_space<vmem>>, %arg3: memref<8x64xf32, #tpu.memory_space<vmem>>, %arg4: memref<8x64xf32, #tpu.memory_space<vmem>>) attributes {dimension_semantics = [#tpu.dimension_semantics<parallel>], iteration_bounds = array<i64: 4>, scalar_prefetch = 0 : i64, scratch_operands = 0 : i64, tpu.core_type = #tpu.core_type<tc>, window_params = [{transform_indices = @transform_0, window_bounds = array<i64: 1>}, {transform_indices = @transform_1, window_bounds = array<i64: 8, 32>}, {transform_indices = @transform_2, window_bounds = array<i64: 8, 64>}, {transform_indices = @transform_3, window_bounds = array<i64: 8, 64>}]} {
    %c0 = arith.constant 0 : index
    %0 = memref.load %arg1[%c0] : memref<1xf32, #tpu.memory_space<smem>>
    %c0_0 = arith.constant 0 : index
    %c0_1 = arith.constant 0 : index
    %1 = vector.load %arg2[%c0_0, %c0_1] : memref<8x32xf32, #tpu.memory_space<vmem>>, vector<8x32xf32>
    %2 = vector.broadcast %0 : f32 to vector<8x32xf32>
    %3 = arith.mulf %2, %1 : vector<8x32xf32>
    %c0_2 = arith.constant 0 : index
    %c0_3 = arith.constant 0 : index
    %4 = vector.load %arg3[%c0_2, %c0_3] : memref<8x64xf32, #tpu.memory_space<vmem>>, vector<8x64xf32>
    %5 = tpu.concatenate %3, %3 in 1 : vector<8x32xf32>, vector<8x32xf32> -> vector<8x64xf32>
    %6 = arith.addf %4, %5 : vector<8x64xf32>
    %c0_4 = arith.constant 0 : index
    %c0_5 = arith.constant 0 : index
    %7 = vector.load %arg4[%c0_4, %c0_5] : memref<8x64xf32, #tpu.memory_space<vmem>>, vector<8x64xf32>
    tpu.vector_store %arg4[%c0_4, %c0_5], %6 {strides = array<i32>} : memref<8x64xf32, #tpu.memory_space<vmem>>, vector<8x64xf32>,
    return
  }
  func.func @transform_0(%arg0: i32) -> i32 {
    %c0_i32 = arith.constant 0 : i32
    %c0_i32_0 = arith.constant 0 : i32
    return %c0_i32 : i32
  }
  func.func @transform_1(%arg0: i32) -> (i32, i32) {
    %c0_i32 = arith.constant 0 : i32
    %c0_i32_0 = arith.constant 0 : i32
    return %arg0, %c0_i32 : i32, i32
  }
  func.func @transform_2(%arg0: i32) -> (i32, i32) {
    %c0_i32 = arith.constant 0 : i32
    %c0_i32_0 = arith.constant 0 : i32
    return %arg0, %c0_i32 : i32, i32
  }
  func.func @transform_3(%arg0: i32) -> (i32, i32) {
    %c0_i32 = arith.constant 0 : i32
    %c0_i32_0 = arith.constant 0 : i32
    return %arg0, %c0_i32 : i32, i32
  }
}

</mosaic_0001>

<llo_original>
// kernel: tpu_custom_call.1
$region0: #{tpu_custom_call.1}
  #allocation0 [shape = 'u32[]', space=smem, size = 0x4, offset = 0x4, fixed_abs, tag = 'smem constant byte address 0x4 - core index']
  #allocation1 [shape = 'u32[144,128]{1,0:T(1,128)}', space=vmem, size = 0x12000, scoped, tag = 'internal scratch']
  #allocation2 [shape = 'f32[1]{0:T(128)S(6)}', space=smem, size = 0x200, scoped, tag = 'scoped memory for tpu_custom_call.1']
  %s0 = inlined_call_operand.<no memory space> [shape: f32[1], index: 0, kind: input, shape index: {}]
  %s1 = inlined_call_operand.vmem [shape: f32[5000,32], index: 1, kind: input, shape index: {}]
  %s2 = inlined_call_operand.vmem [shape: f32[32,64], index: 2, kind: input, shape index: {}]
  %s3 = inlined_call_operand.hbm [shape: f32[32,64], index: 3, kind: output, shape index: {}]
  %s4 = sld [smem:[#allocation0]]
  $region45: #{tpu_custom_call.1} parent=0
    _
  %s6 = ssub.s32 1, %s4
  %s7 = scalar_select 0, %s6, %s4
  %8 = sst [smem:[#allocation2]] %s0
  $region1: #{tpu_custom_call.1} parent=0
    #allocation3 [shape = 'u8[8192]{0}', space=vmem, size = 0x2000, scoped, tag = 'output window, operand 0']
    #allocation4 [shape = 's32[2]{0}', space=sflag, size = 0x8, scoped, tag = 'scoped memory for tpu_custom_call.1']
    %9 = vsyncpa [#allocation4], 0
    %s10 = scalar_lea.sflag [#allocation4], 1
    %11 = vsyncpa %s10, 0
    loop: start=0, step=1, limit=6
    $region2: #{tpu_custom_call.1} parent=1 // loop_pre_header
      _
    $region3: #{tpu_custom_call.1} parent=1 // loop_header
      %s13 = sphi 0, %s17
      %p14 = scmp.ge.s32.totalorder %s13, 6
      %s21 = sphi 0, %s21
      %s23 = sphi 0, %s21
      %s24 = sphi 0, %s23
      %s38 = sphi 0, %s24
      %s44 = sphi 0, %s46
      %s47 = sphi 0, %s44
      %s48 = sphi 0, %s47
      %s64 = sphi 0, %s48
      %s70 = sphi 0, %s72
      %s73 = sphi 0, %s70
      %s74 = sphi 0, %s73
      %s90 = sphi 0, %s74
      %s96 = sphi 0, %s98
      %s99 = sphi 0, %s96
      %s100 = sphi 0, %s99
      %s116 = sphi 0, %s100
    $region4: #{tpu_custom_call.1} parent=1 // loop_header_branch
      %16 = sbr.rel (%p14) target = $region8
    $region5: #{tpu_custom_call.1} parent=1 // loop_body
      %s18 = ssub.s32 %s13, 1
      %s19 = ssub.s32 %s13, 2
      %s20 = sadd.s32 %s13, 1
      %s22 = sadd.s32 %s21, 1
      %p25 = scmp.eq.s32.totalorder %s13, 3
      %p26 = scmp.ne.s32.totalorder %s21, %s23
      %p27 = scmp.eq.s32.totalorder %s13, 0
      %p28 = por %p26, %p27
      %p29 = scmp.ne.s32.totalorder %s21, %s23
      %p30 = scmp.eq.s32.totalorder %s18, 3
      %p31 = por %p29, %p30
      %p32 = scmp.ne.s32.totalorder %s23, %s24
      %p33 = scmp.eq.s32.totalorder %s18, 0
      %p34 = por %p32, %p33
      %p35 = scmp.ne.s32.totalorder %s23, %s24
      %p36 = scmp.eq.s32.totalorder %s19, 3
      %p37 = por %p35, %p36
      %p39 = scmp.ne.s32.totalorder %s24, %s38
      %p40 = scmp.eq.s32.totalorder %s19, 0
      %p41 = por %p39, %p40
      %s42 = ssub.s32 %s13, %s20
      %p43 = scmp.eq.s32.totalorder %s42, 0
      %s45 = sadd.s32 %s44, 1
      %s46 = scalar_select %p43, %s44, %s45
      %p49 = pneg %p43
      %p50 = scmp.eq.s32.totalorder %s13, 3
      %p51 = por %p49, %p50
      %p52 = scmp.ne.s32.totalorder %s44, %s47
      %p53 = scmp.eq.s32.totalorder %s13, 0
      %p54 = por %p52, %p53
      %p55 = scmp.ne.s32.totalorder %s44, %s47
      %p56 = scmp.eq.s32.totalorder %s18, 3
      %p57 = por %p55, %p56
      %p58 = scmp.ne.s32.totalorder %s47, %s48
      %p59 = scmp.eq.s32.totalorder %s18, 0
      %p60 = por %p58, %p59
      %p61 = scmp.ne.s32.totalorder %s47, %s48
      %p62 = scmp.eq.s32.totalorder %s19, 3
      %p63 = por %p61, %p62
      %p65 = scmp.ne.s32.totalorder %s48, %s64
      %p66 = scmp.eq.s32.totalorder %s19, 0
      %p67 = por %p65, %p66
      %s68 = ssub.s32 %s13, %s20
      %p69 = scmp.eq.s32.totalorder %s68, 0
      %s71 = sadd.s32 %s70, 1
      %s72 = scalar_select %p69, %s70, %s71
      %p75 = pneg %p69
      %p76 = scmp.eq.s32.totalorder %s13, 3
      %p77 = por %p75, %p76
      %p78 = scmp.ne.s32.totalorder %s70, %s73
      %p79 = scmp.eq.s32.totalorder %s13, 0
      %p80 = por %p78, %p79
      %p81 = scmp.ne.s32.totalorder %s70, %s73
      %p82 = scmp.eq.s32.totalorder %s18, 3
      %p83 = por %p81, %p82
      %p84 = scmp.ne.s32.totalorder %s73, %s74
      %p85 = scmp.eq.s32.totalorder %s18, 0
      %p86 = por %p84, %p85
      %p87 = scmp.ne.s32.totalorder %s73, %s74
      %p88 = scmp.eq.s32.totalorder %s19, 3
      %p89 = por %p87, %p88
      %p91 = scmp.ne.s32.totalorder %s74, %s90
      %p92 = scmp.eq.s32.totalorder %s19, 0
      %p93 = por %p91, %p92
      %s94 = ssub.s32 %s13, %s20
      %p95 = scmp.eq.s32.totalorder %s94, 0
      %s97 = sadd.s32 %s96, 1
      %s98 = scalar_select %p95, %s96, %s97
      %p101 = pneg %p95
      %p102 = scmp.eq.s32.totalorder %s13, 3
      %p103 = por %p101, %p102
      %p104 = scmp.ne.s32.totalorder %s96, %s99
      %p105 = scmp.eq.s32.totalorder %s13, 0
      %p106 = por %p104, %p105
      %p107 = scmp.ne.s32.totalorder %s96, %s99
      %p108 = scmp.eq.s32.totalorder %s18, 3
      %p109 = por %p107, %p108
      %p110 = scmp.ne.s32.totalorder %s99, %s100
      %p111 = scmp.eq.s32.totalorder %s18, 0
      %p112 = por %p110, %p111
      %p113 = scmp.ne.s32.totalorder %s99, %s100
      %p114 = scmp.eq.s32.totalorder %s19, 3
      %p115 = por %p113, %p114
      %p117 = scmp.ne.s32.totalorder %s100, %s116
      %p118 = scmp.eq.s32.totalorder %s19, 0
      %p119 = por %p117, %p118
      %p120 = scmp.le.s32.totalorder 1, %s13
      %p121 = scmp.lt.s32.totalorder %s13, 5
      %p122 = pnand %p120, %p121
      %p123 = pneg %p122
      // Predicated region
      $region9: #{tpu_custom_call.1} parent=5 // pred_check
        _
      $region10: #{tpu_custom_call.1} parent=5 // pred_check_branch
        %125 = sbr.rel (%p122) target = $region12
      $region11: #{tpu_custom_call.1} parent=5 // pred_region
        %s126 = ssub.s32 %s13, 1
        // Predicated region
        $region13: #{tpu_custom_call.1} parent=11 // pred_check
          %p127 = pneg %p34
        $region14: #{tpu_custom_call.1} parent=11 // pred_check_branch
          %129 = sbr.rel (%p127) target = $region16
        $region15: #{tpu_custom_call.1} parent=11 // pred_region
          _
        $region16: #{tpu_custom_call.1} parent=11 // pred_fallthru
          _
      $region12: #{tpu_custom_call.1} parent=5 // pred_fallthru
        _
      %p130 = scmp.lt.s32.totalorder %s13, 4
      // Predicated region
      $region17: #{tpu_custom_call.1} parent=5 // pred_check
        %p131 = pneg %p130
      $region18: #{tpu_custom_call.1} parent=5 // pred_check_branch
        %133 = sbr.rel (%p131) target = $region20
      $region19: #{tpu_custom_call.1} parent=5 // pred_region
        // Predicated region
        $region21: #{tpu_custom_call.1} parent=19 // pred_check
          %p134 = pneg %p54
        $region22: #{tpu_custom_call.1} parent=19 // pred_check_branch
          %136 = sbr.rel (%p134) target = $region24
        $region23: #{tpu_custom_call.1} parent=19 // pred_region
          %p137 = scmp.lt.s32.totalorder %s13, 624
          %s138 = scalar_select %p137, %s13, 624
          %s139 = smul.addr %s138, 8
          %s140 = scalar_lea.vmem %s1, %s139
        $region24: #{tpu_custom_call.1} parent=19 // pred_fallthru
          _
        // Predicated region
        $region25: #{tpu_custom_call.1} parent=19 // pred_check
          %p141 = pneg %p80
        $region26: #{tpu_custom_call.1} parent=19 // pred_check_branch
          %143 = sbr.rel (%p141) target = $region28
        $region27: #{tpu_custom_call.1} parent=19 // pred_region
          %p144 = scmp.lt.s32.totalorder %s13, 3
          %s145 = scalar_select %p144, %s13, 3
          %s146 = smul.addr %s145, 8
          %s147 = scalar_lea.vmem %s2, %s146
        $region28: #{tpu_custom_call.1} parent=19 // pred_fallthru
          _
      $region20: #{tpu_custom_call.1} parent=5 // pred_fallthru
        _
      %p148 = scmp.le.s32.totalorder 1, %s13
      %p149 = scmp.lt.s32.totalorder %s13, 5
      %p150 = pnand %p148, %p149
      %p151 = pneg %p150
      // Predicated region
      $region29: #{tpu_custom_call.1} parent=5 // pred_check
        _
      $region30: #{tpu_custom_call.1} parent=5 // pred_check_branch
        %153 = sbr.rel (%p150) target = $region32
      $region31: #{tpu_custom_call.1} parent=5 // pred_region
        %s154 = ssub.s32 %s13, 1
        %p155 = pneg %p34
        %p156 = pneg %p31
        %p157 = scmp.lt.s32.totalorder %s18, 624
        %s158 = scalar_select %p157, %s18, 624
        %s159 = smul.addr %s158, 8
        %s160 = scalar_lea.vmem %s1, %s159
        %p161 = pneg %p60
        %p162 = pneg %p57
        %p163 = scmp.lt.s32.totalorder %s18, 3
        %s164 = scalar_select %p163, %s18, 3
        %s165 = smul.addr %s164, 8
        %s166 = scalar_lea.vmem %s2, %s165
        %p167 = pneg %p86
        %p168 = pneg %p83
        %p169 = pneg %p112
        %p170 = pneg %p109
        %s171 = sand.u32 %s99, 1
        %s172 = scalar_lea.sflag [#allocation4], %s171
        %s173 = sand.u32 %s99, 1
        %s174 = smul.addr %s173, 8
        %s175 = scalar_lea.vmem [#allocation3], %s174
        %p176 = scmp.lt.s32.totalorder %s18, 624
        %s177 = scalar_select %p176, %s18, 624
        %s178 = smul.addr %s177, 8
        %s179 = scalar_lea.vmem %s1, %s178
        %p180 = scmp.lt.s32.totalorder %s18, 3
        %s181 = scalar_select %p180, %s18, 3
        %s182 = smul.addr %s181, 8
        %s183 = scalar_lea.vmem %s2, %s182
        %s184 = sld [smem:[#allocation2]]
        %v185 = vld [vmem:[%s179] sm:$0xff]
        %v186 = vstv %s184
        %v187 = vmul.f32 %v186, %v185
        %v188 = vld [vmem:[%s183] sm:$0xff]
        %190 = vrot.lane.b32.xlu0 %v187, 32
        %v191 = vpop.permute.xlu0 %190
        %vm193 = vcmask 261120
        %v194 = vsel %vm193, %v187, %v191
        %v195 = vadd.f32 %v188, %v194
        %vm196 = vcmask 523264
        %197 = vst.msk [vmem:[%s175] sm:$0xff] %vm196, %v195
        %s198 = sand.u32 %s99, 1
        %s199 = scalar_lea.sflag [#allocation4], %s198
        %s200 = sand.u32 %s99, 1
        %s201 = smul.addr %s200, 8
        %s202 = scalar_lea.vmem [#allocation3], %s201
        // Predicated region
        $region33: #{tpu_custom_call.1} parent=31 // pred_check
          %p203 = pneg %p109
        $region34: #{tpu_custom_call.1} parent=31 // pred_check_branch
          %205 = sbr.rel (%p203) target = $region36
        $region35: #{tpu_custom_call.1} parent=31 // pred_region
          %s207 = ssub.s32 128, 128
          %208 = vsyncadd %s199, %s207
          %s209 = smul.addr %s18, 128
          %s210 = scalar_lea.hbm %s3, %s209
          %s212 = sshll.u32 %s202, 4
          %s213 = int_to_ptr.vmem [resolvable:$true] %s212
          %215 = dma.vmem_to_hbm [thread:$0]  %s213, 128, %s210, %s199
        $region36: #{tpu_custom_call.1} parent=31 // pred_fallthru
          _
      $region32: #{tpu_custom_call.1} parent=5 // pred_fallthru
        _
      %p216 = scmp.le.s32.totalorder 2, %s13
      // Predicated region
      $region37: #{tpu_custom_call.1} parent=5 // pred_check
        %p217 = pneg %p216
      $region38: #{tpu_custom_call.1} parent=5 // pred_check_branch
        %219 = sbr.rel (%p217) target = $region40
      $region39: #{tpu_custom_call.1} parent=5 // pred_region
        %s220 = ssub.s32 %s13, 2
        // Predicated region
        $region41: #{tpu_custom_call.1} parent=39 // pred_check
          %p221 = pneg %p115
        $region42: #{tpu_custom_call.1} parent=39 // pred_check_branch
          %223 = sbr.rel (%p221) target = $region44
        $region43: #{tpu_custom_call.1} parent=39 // pred_region
          %s224 = sand.u32 %s100, 1
          %s225 = scalar_lea.sflag [#allocation4], %s224
          %s226 = sand.u32 %s100, 1
          %s227 = smul.addr %s226, 8
          %s228 = scalar_lea.vmem [#allocation3], %s227
          %229 = dma.done %s225, 128
        $region44: #{tpu_custom_call.1} parent=39 // pred_fallthru
          _
      $region40: #{tpu_custom_call.1} parent=5 // pred_fallthru
        _
    $region6: #{tpu_custom_call.1} parent=1 // loop_footer
      %s17 = sadd.s32 1, %s13
    $region7: #{tpu_custom_call.1} parent=1 // loop_footer_branch
      %12 = sbr.rel target = $region3
    $region8: #{tpu_custom_call.1} parent=1 // loop_exit
      _
    %230 = vsyncpa [#allocation4], 1
    %s231 = scalar_lea.sflag [#allocation4], 1
    %232 = vsyncpa %s231, 1

</llo_original>
